<compile_context>
chip_gen: v7x
topology: tpu7x:2x2x1
jax: 0.10.0
libtpu: 0.0.40
codegen_flags: <defaults>
</compile_context>

<pallas_src>
import jax
import jax.numpy as jnp
from jax.experimental import pallas as pl
from jax.experimental.pallas import tpu as pltpu

HIDDEN = 256


def qnetwork_kernel(x_ref, a_ref, w1x_ref, w1a_ref, b1_ref, w2_ref, b2_ref,
                    w3_ref, b3_ref, out_ref):
    # x_ref  : (TB, obs_dim) f32      a_ref  : (TB, act_dim) f32
    # w1x_ref: (obs_dim, 256) bf16    w1a_ref: (act_dim, 256) bf16
    # b1_ref : (1, 256) f32
    # w2_ref : (256, 256) bf16        b2_ref : (1, 256) f32
    # w3_ref : (1, 256) f32           b3_ref : (1,) f32 in SMEM
    # out_ref: (TB, 1) f32
    xb = x_ref[...].astype(jnp.bfloat16)
    ab = a_ref[...].astype(jnp.bfloat16)

    # fc1: split-K matmul replaces the concat([x, a]) of the reference.
    h1 = (jnp.dot(xb, w1x_ref[...], preferred_element_type=jnp.float32)
          + jnp.dot(ab, w1a_ref[...], preferred_element_type=jnp.float32)
          + b1_ref[...])
    h1 = jnp.maximum(h1, 0.0).astype(jnp.bfloat16)   # bias/ReLU in f32, feed MXU bf16

    # fc2
    h2 = jnp.dot(h1, w2_ref[...], preferred_element_type=jnp.float32) + b2_ref[...]
    h2 = jnp.maximum(h2, 0.0)

    # fc3: (TB, 256) . (256,) -> (TB, 1) as f32 elementwise mul + lane reduce.
    out_ref[...] = jnp.sum(h2 * w3_ref[...], axis=-1, keepdims=True) + b3_ref[0]


def init_params(key, obs_dim, act_dim):
    """PyTorch-layout f32 params with default-Linear-style U(-1/sqrt(fan_in), ...) init."""
    d_in = obs_dim + act_dim
    ks = jax.random.split(key, 6)

    def u(k, shape, fan_in):
        bound = 1.0 / jnp.sqrt(jnp.float32(fan_in))
        return jax.random.uniform(k, shape, jnp.float32, -bound, bound)

    w1 = u(ks[0], (HIDDEN, d_in), d_in)
    b1 = u(ks[1], (HIDDEN,), d_in)
    w2 = u(ks[2], (HIDDEN, HIDDEN), HIDDEN)
    b2 = u(ks[3], (HIDDEN,), HIDDEN)
    w3 = u(ks[4], (1, HIDDEN), HIDDEN)
    b3 = u(ks[5], (1,), HIDDEN)
    return (w1, b1, w2, b2, w3, b3)


def prepare_params(params, obs_dim):
    """One-time re-layout for the kernel (done OUTSIDE the hot path):
       pre-transpose to (in, out), split W1 into obs/act blocks, cast to bf16."""
    w1, b1, w2, b2, w3, b3 = params
    return (
        jnp.asarray(w1[:, :obs_dim].T, jnp.bfloat16),   # (obs_dim, 256)
        jnp.asarray(w1[:, obs_dim:].T, jnp.bfloat16),   # (act_dim, 256)
        b1[None, :].astype(jnp.float32),                # (1, 256)
        jnp.asarray(w2.T, jnp.bfloat16),                # (256, 256)
        b2[None, :].astype(jnp.float32),                # (1, 256)
        w3.astype(jnp.float32),                         # (1, 256), used in f32 reduce
        b3.astype(jnp.float32),                         # (1,) scalar -> SMEM
    )


def _qnetwork_pallas(x2d, a2d, prepared, tile_b):
    """x2d: (B, obs_dim) f32, a2d: (B, act_dim) f32, B % tile_b == 0 -> (B, 1) f32."""
    w1x, w1a, b1, w2, b2, w3, b3 = prepared
    B, obs_dim = x2d.shape
    act_dim = a2d.shape[1]
    assert B % tile_b == 0
    grid = (B // tile_b,)

    return pl.pallas_call(
        qnetwork_kernel,
        out_shape=jax.ShapeDtypeStruct((B, 1), jnp.float32),
        grid=grid,
        in_specs=[
            pl.BlockSpec((tile_b, obs_dim), lambda i: (i, 0)),     # x tile
            pl.BlockSpec((tile_b, act_dim), lambda i: (i, 0)),     # a tile
            pl.BlockSpec((obs_dim, HIDDEN), lambda i: (0, 0)),     # W1x (resident)
            pl.BlockSpec((act_dim, HIDDEN), lambda i: (0, 0)),     # W1a (resident)
            pl.BlockSpec((1, HIDDEN), lambda i: (0, 0)),           # b1  (resident)
            pl.BlockSpec((HIDDEN, HIDDEN), lambda i: (0, 0)),      # W2  (resident)
            pl.BlockSpec((1, HIDDEN), lambda i: (0, 0)),           # b2  (resident)
            pl.BlockSpec((1, HIDDEN), lambda i: (0, 0)),           # W3  (resident)
            pl.BlockSpec(memory_space=pltpu.MemorySpace.SMEM),     # b3 scalar
        ],
        out_specs=pl.BlockSpec((tile_b, 1), lambda i: (i, 0)),
        compiler_params=pltpu.CompilerParams(
            dimension_semantics=("parallel",)),
    )(x2d, a2d, w1x, w1a, b1, w2, b2, w3, b3)


def qnetwork_forward(x, a, prepared):
    """Exact module semantics: x (obs_dim,), a (act_dim,) -> (1,) float32."""
    out = _qnetwork_pallas(x[None, :], a[None, :], prepared, tile_b=1)
    return out[0]


def qnetwork_forward_batch(x, a, prepared, tile_b=128):
    """Optimized path: x (B, obs_dim), a (B, act_dim) -> (B, 1).
       tile_b=128 matches the v5e MXU height; use 256 on v6e/v7x if desired."""
    B = x.shape[0]
    pad = (-B) % tile_b
    if pad:
        x = jnp.concatenate([x, jnp.zeros((pad, x.shape[1]), x.dtype)], axis=0)
        a = jnp.concatenate([a, jnp.zeros((pad, a.shape[1]), a.dtype)], axis=0)
    out = _qnetwork_pallas(x, a, prepared, tile_b)
    return out[:B]


def qnetwork_ref(x, a, params):
    """Plain-JAX reference that mirrors the kernel's bf16-weight / f32-accumulate
       numerics (works for 1-D single sample or 2-D batch)."""
    w1, b1, w2, b2, w3, b3 = params
    bf = lambda t: t.astype(jnp.bfloat16).astype(jnp.float32)
    xa = jnp.concatenate([x, a], axis=-1)
    h1 = jnp.maximum(bf(xa) @ bf(w1).T + b1, 0.0)
    h2 = jnp.maximum(bf(h1) @ bf(w2).T + b2, 0.0)
    return h2 @ w3.T + b3


if __name__ == "__main__":
    obs_dim, act_dim = 24, 8

    key = jax.random.PRNGKey(0)
    k_params, k_x, k_a, k_bx, k_ba = jax.random.split(key, 5)

    params = init_params(k_params, obs_dim, act_dim)
    prepared = prepare_params(params, obs_dim)      # one-time re-layout (not per call)

    # --- single-sample path (matches the PyTorch forward exactly) ---
    x = jax.random.normal(k_x, (obs_dim,), jnp.float32)
    a = jax.random.normal(k_a, (act_dim,), jnp.float32)
    out1 = jax.block_until_ready(qnetwork_forward(x, a, prepared))
    ref1 = qnetwork_ref(x, a, params)
    assert out1.shape == (1,)
    assert jnp.allclose(out1, ref1, atol=2e-2, rtol=2e-2)

    # --- batched path (many (x, a) pairs; weights stay resident in VMEM) ---
    B = 256
    xb = jax.random.normal(k_bx, (B, obs_dim), jnp.float32)
    ab = jax.random.normal(k_ba, (B, act_dim), jnp.float32)
    outb = jax.block_until_ready(qnetwork_forward_batch(xb, ab, prepared, tile_b=128))
    refb = qnetwork_ref(xb, ab, params)
    assert outb.shape == (B, 1)
    assert jnp.allclose(outb, refb, atol=2e-2, rtol=2e-2)

    print("KERNEL_OK")
</pallas_src>

<mosaic_0001>
module attributes {stable_mosaic.version = 11 : i64} {
  func.func @qnetwork_kernel(%arg0: i32, %arg1: memref<1x24xf32, #tpu.memory_space<vmem>>, %arg2: memref<1x8xf32, #tpu.memory_space<vmem>>, %arg3: memref<24x256xbf16, #tpu.memory_space<vmem>>, %arg4: memref<8x256xbf16, #tpu.memory_space<vmem>>, %arg5: memref<1x256xf32, #tpu.memory_space<vmem>>, %arg6: memref<256x256xbf16, #tpu.memory_space<vmem>>, %arg7: memref<1x256xf32, #tpu.memory_space<vmem>>, %arg8: memref<1x256xf32, #tpu.memory_space<vmem>>, %arg9: memref<1xf32, #tpu.memory_space<smem>>, %arg10: memref<1x1xf32, #tpu.memory_space<vmem>>) attributes {dimension_semantics = [#tpu.dimension_semantics<parallel>], iteration_bounds = array<i64: 1>, scalar_prefetch = 0 : i64, scratch_operands = 0 : i64, tpu.core_type = #tpu.core_type<tc>, window_params = [{transform_indices = @transform_0, window_bounds = array<i64: 1, 24>}, {transform_indices = @transform_1, window_bounds = array<i64: 1, 8>}, {pipeline_mode = #tpu.pipeline_mode<synchronous>, transform_indices = @transform_2, window_bounds = array<i64: 24, 256>}, {pipeline_mode = #tpu.pipeline_mode<synchronous>, transform_indices = @transform_3, window_bounds = array<i64: 8, 256>}, {pipeline_mode = #tpu.pipeline_mode<synchronous>, transform_indices = @transform_4, window_bounds = array<i64: 1, 256>}, {pipeline_mode = #tpu.pipeline_mode<synchronous>, transform_indices = @transform_5, window_bounds = array<i64: 256, 256>}, {pipeline_mode = #tpu.pipeline_mode<synchronous>, transform_indices = @transform_6, window_bounds = array<i64: 1, 256>}, {pipeline_mode = #tpu.pipeline_mode<synchronous>, transform_indices = @transform_7, window_bounds = array<i64: 1, 256>}, {transform_indices = @transform_8, window_bounds = array<i64: 1>}, {transform_indices = @transform_9, window_bounds = array<i64: 1, 1>}]} {
    %c0 = arith.constant 0 : index
    %c0_0 = arith.constant 0 : index
    %0 = vector.load %arg1[%c0, %c0_0] : memref<1x24xf32, #tpu.memory_space<vmem>>, vector<1x24xf32>
    %1 = arith.truncf %0 : vector<1x24xf32> to vector<1x24xbf16>
    %c0_1 = arith.constant 0 : index
    %c0_2 = arith.constant 0 : index
    %2 = vector.load %arg2[%c0_1, %c0_2] : memref<1x8xf32, #tpu.memory_space<vmem>>, vector<1x8xf32>
    %3 = arith.truncf %2 : vector<1x8xf32> to vector<1x8xbf16>
    %c0_3 = arith.constant 0 : index
    %c0_4 = arith.constant 0 : index
    %4 = vector.load %arg3[%c0_3, %c0_4] : memref<24x256xbf16, #tpu.memory_space<vmem>>, vector<24x256xbf16>
    %cst = arith.constant dense<0.000000e+00> : vector<1x256xf32>
    %5 = tpu.matmul %1, %4, %cst {dimension_numbers = #tpu.dot_dimension_numbers<[1], [0], [0], [1], [0, 0, 1, 1], [], []>} : vector<1x24xbf16>, vector<24x256xbf16>, vector<1x256xf32> -> vector<1x256xf32>
    %c0_5 = arith.constant 0 : index
    %c0_6 = arith.constant 0 : index
    %6 = vector.load %arg4[%c0_5, %c0_6] : memref<8x256xbf16, #tpu.memory_space<vmem>>, vector<8x256xbf16>
    %cst_7 = arith.constant dense<0.000000e+00> : vector<1x256xf32>
    %7 = tpu.matmul %3, %6, %cst_7 {dimension_numbers = #tpu.dot_dimension_numbers<[1], [0], [0], [1], [0, 0, 1, 1], [], []>} : vector<1x8xbf16>, vector<8x256xbf16>, vector<1x256xf32> -> vector<1x256xf32>
    %8 = arith.addf %5, %7 : vector<1x256xf32>
    %c0_8 = arith.constant 0 : index
    %c0_9 = arith.constant 0 : index
    %9 = vector.load %arg5[%c0_8, %c0_9] : memref<1x256xf32, #tpu.memory_space<vmem>>, vector<1x256xf32>
    %10 = arith.addf %8, %9 : vector<1x256xf32>
    %cst_10 = arith.constant 0.000000e+00 : f32
    %11 = vector.broadcast %cst_10 : f32 to vector<1x256xf32>
    %12 = arith.maximumf %10, %11 : vector<1x256xf32>
    %13 = arith.truncf %12 : vector<1x256xf32> to vector<1x256xbf16>
    %c0_11 = arith.constant 0 : index
    %c0_12 = arith.constant 0 : index
    %14 = vector.load %arg6[%c0_11, %c0_12] : memref<256x256xbf16, #tpu.memory_space<vmem>>, vector<256x256xbf16>
    %cst_13 = arith.constant dense<0.000000e+00> : vector<1x256xf32>
    %15 = tpu.matmul %13, %14, %cst_13 {dimension_numbers = #tpu.dot_dimension_numbers<[1], [0], [0], [1], [0, 0, 1, 1], [], []>} : vector<1x256xbf16>, vector<256x256xbf16>, vector<1x256xf32> -> vector<1x256xf32>
    %c0_14 = arith.constant 0 : index
    %c0_15 = arith.constant 0 : index
    %16 = vector.load %arg7[%c0_14, %c0_15] : memref<1x256xf32, #tpu.memory_space<vmem>>, vector<1x256xf32>
    %17 = arith.addf %15, %16 : vector<1x256xf32>
    %cst_16 = arith.constant 0.000000e+00 : f32
    %18 = vector.broadcast %cst_16 : f32 to vector<1x256xf32>
    %19 = arith.maximumf %17, %18 : vector<1x256xf32>
    %c0_17 = arith.constant 0 : index
    %c0_18 = arith.constant 0 : index
    %20 = vector.load %arg8[%c0_17, %c0_18] : memref<1x256xf32, #tpu.memory_space<vmem>>, vector<1x256xf32>
    %21 = arith.mulf %19, %20 : vector<1x256xf32>
    %cst_19 = arith.constant dense<0.000000e+00> : vector<1xf32>
    %22 = vector.multi_reduction <add>, %21, %cst_19 [1] : vector<1x256xf32> to vector<1xf32>
    %23 = vector.shape_cast %22 : vector<1xf32> to vector<1x1xf32>
    %c0_20 = arith.constant 0 : index
    %24 = memref.load %arg9[%c0_20] : memref<1xf32, #tpu.memory_space<smem>>
    %25 = vector.broadcast %24 : f32 to vector<1x1xf32>
    %26 = arith.addf %23, %25 : vector<1x1xf32>
    %c0_21 = arith.constant 0 : index
    %c0_22 = arith.constant 0 : index
    %27 = vector.load %arg10[%c0_21, %c0_22] : memref<1x1xf32, #tpu.memory_space<vmem>>, vector<1x1xf32>
    tpu.vector_store %arg10[%c0_21, %c0_22], %26 {strides = array<i32>} : memref<1x1xf32, #tpu.memory_space<vmem>>, vector<1x1xf32>,
    return
  }
  func.func @transform_0(%arg0: i32) -> (i32, i32) {
    %c0_i32 = arith.constant 0 : i32
    %c0_i32_0 = arith.constant 0 : i32
    return %arg0, %c0_i32 : i32, i32
  }
  func.func @transform_1(%arg0: i32) -> (i32, i32) {
    %c0_i32 = arith.constant 0 : i32
    %c0_i32_0 = arith.constant 0 : i32
    return %arg0, %c0_i32 : i32, i32
  }
  func.func @transform_2(%arg0: i32) -> (i32, i32) {
    %c0_i32 = arith.constant 0 : i32
    %c0_i32_0 = arith.constant 0 : i32
    %c0_i32_1 = arith.constant 0 : i32
    return %c0_i32, %c0_i32_0 : i32, i32
  }
  func.func @transform_3(%arg0: i32) -> (i32, i32) {
    %c0_i32 = arith.constant 0 : i32
    %c0_i32_0 = arith.constant 0 : i32
    %c0_i32_1 = arith.constant 0 : i32
    return %c0_i32, %c0_i32_0 : i32, i32
  }
  func.func @transform_4(%arg0: i32) -> (i32, i32) {
    %c0_i32 = arith.constant 0 : i32
    %c0_i32_0 = arith.constant 0 : i32
    %c0_i32_1 = arith.constant 0 : i32
    return %c0_i32, %c0_i32_0 : i32, i32
  }
  func.func @transform_5(%arg0: i32) -> (i32, i32) {
    %c0_i32 = arith.constant 0 : i32
    %c0_i32_0 = arith.constant 0 : i32
    %c0_i32_1 = arith.constant 0 : i32
    return %c0_i32, %c0_i32_0 : i32, i32
  }
  func.func @transform_6(%arg0: i32) -> (i32, i32) {
    %c0_i32 = arith.constant 0 : i32
    %c0_i32_0 = arith.constant 0 : i32
    %c0_i32_1 = arith.constant 0 : i32
    return %c0_i32, %c0_i32_0 : i32, i32
  }
  func.func @transform_7(%arg0: i32) -> (i32, i32) {
    %c0_i32 = arith.constant 0 : i32
    %c0_i32_0 = arith.constant 0 : i32
    %c0_i32_1 = arith.constant 0 : i32
    return %c0_i32, %c0_i32_0 : i32, i32
  }
  func.func @transform_8(%arg0: i32) -> i32 {
    %c0_i32 = arith.constant 0 : i32
    %c0_i32_0 = arith.constant 0 : i32
    return %c0_i32 : i32
  }
  func.func @transform_9(%arg0: i32) -> (i32, i32) {
    %c0_i32 = arith.constant 0 : i32
    %c0_i32_0 = arith.constant 0 : i32
    return %arg0, %c0_i32 : i32, i32
  }
}

</mosaic_0001>

<llo_original>
// kernel: tpu_custom_call.1
$region0: #{tpu_custom_call.1}
  #allocation0 [shape = 'u32[]', space=smem, size = 0x4, offset = 0x4, fixed_abs, tag = 'smem constant byte address 0x4 - core index']
  #allocation1 [shape = 'u32[144,128]{1,0:T(1,128)}', space=vmem, size = 0x12000, scoped, tag = 'internal scratch']
  #allocation2 [shape = 'f32[1]{0:T(128)S(6)}', space=smem, size = 0x200, scoped, tag = 'scoped memory for tpu_custom_call.1']
  %s0 = inlined_call_operand.vmem [shape: f32[1,24], index: 0, kind: input, shape index: {}]
  %s1 = inlined_call_operand.hbm [shape: f32[1,8], index: 1, kind: input, shape index: {}]
  %s2 = inlined_call_operand.hbm [shape: bf16[24,256], index: 2, kind: input, shape index: {}]
  %s3 = inlined_call_operand.vmem [shape: bf16[8,256], index: 3, kind: input, shape index: {}]
  %s4 = inlined_call_operand.vmem [shape: f32[1,256], index: 4, kind: input, shape index: {}]
  %s5 = inlined_call_operand.hbm [shape: bf16[256,256], index: 5, kind: input, shape index: {}]
  %s6 = inlined_call_operand.vmem [shape: f32[1,256], index: 6, kind: input, shape index: {}]
  %s7 = inlined_call_operand.vmem [shape: f32[1,256], index: 7, kind: input, shape index: {}]
  %s8 = inlined_call_operand.<no memory space> [shape: f32[1], index: 8, kind: input, shape index: {}]
  %s9 = inlined_call_operand.hbm [shape: f32[1,1], index: 9, kind: output, shape index: {}]
  %s10 = sld [smem:[#allocation0]]
  $region58: #{tpu_custom_call.1} parent=0
    _
  %s12 = ssub.s32 1, %s10
  %s13 = scalar_select 0, %s12, %s10
  %14 = sst [smem:[#allocation2]] %s8
  $region1: #{tpu_custom_call.1} parent=0
    #allocation3 [shape = 'u8[512]{0}', space=vmem, size = 0x400, scoped, tag = 'input window, operand 1, single buffered']
    #allocation4 [shape = 's32[1]{0}', space=sflag, size = 0x4, scoped, tag = 'scoped memory for tpu_custom_call.1']
    #allocation5 [shape = 's32[1]{0}', space=sflag, size = 0x4, scoped, tag = 'scoped memory for tpu_custom_call.1']
    #allocation6 [shape = 'u8[12288]{0}', space=vmem, size = 0x3000, scoped, tag = 'input window, operand 2, single buffered']
    #allocation7 [shape = 's32[1]{0}', space=sflag, size = 0x4, scoped, tag = 'scoped memory for tpu_custom_call.1']
    #allocation8 [shape = 'u8[131072]{0}', space=vmem, size = 0x20000, scoped, tag = 'input window, operand 5, single buffered']
    #allocation9 [shape = 'u8[512]{0}', space=vmem, size = 0x400, scoped, tag = 'output window, operand 0, single buffered']
    %15 = vsyncpa [#allocation4], 0
    %16 = vsyncpa [#allocation7], 0
    %17 = vsyncpa [#allocation5], 0
    // Predicated region
    $region2: #{tpu_custom_call.1} parent=1 // pred_check
      _
    $region3: #{tpu_custom_call.1} parent=1 // pred_check_branch
      %19 = sbr.rel (0) target = $region5
    $region4: #{tpu_custom_call.1} parent=1 // pred_region
      _
    $region5: #{tpu_custom_call.1} parent=1 // pred_fallthru
      _
    // Predicated region
    $region6: #{tpu_custom_call.1} parent=1 // pred_check
      _
    $region7: #{tpu_custom_call.1} parent=1 // pred_check_branch
      %21 = sbr.rel (0) target = $region9
    $region8: #{tpu_custom_call.1} parent=1 // pred_region
      %s23 = ssub.s32 16, 16
      %24 = vsyncadd [#allocation4], %s23
      %s26 = sshll.u32 [#allocation3], 4
      %s27 = int_to_ptr.vmem [resolvable:$true] %s26
      %29 = dma.hbm_to_vmem [thread:$0]  %s1, 16, %s27, [#allocation4]
    $region9: #{tpu_custom_call.1} parent=1 // pred_fallthru
      _
    // Predicated region
    $region10: #{tpu_custom_call.1} parent=1 // pred_check
      _
    $region11: #{tpu_custom_call.1} parent=1 // pred_check_branch
      %31 = sbr.rel (0) target = $region13
    $region12: #{tpu_custom_call.1} parent=1 // pred_region
      %s33 = ssub.s32 384, 384
      %34 = vsyncadd [#allocation7], %s33
      %s35 = sshll.u32 [#allocation6], 4
      %s36 = int_to_ptr.vmem [resolvable:$true] %s35
      %41 = dma.hbm_to_vmem [thread:$0]  %s2, 384, %s36, [#allocation7], 128, 128, 8
    $region13: #{tpu_custom_call.1} parent=1 // pred_fallthru
      _
    // Predicated region
    $region14: #{tpu_custom_call.1} parent=1 // pred_check
      _
    $region15: #{tpu_custom_call.1} parent=1 // pred_check_branch
      %43 = sbr.rel (0) target = $region17
    $region16: #{tpu_custom_call.1} parent=1 // pred_region
      _
    $region17: #{tpu_custom_call.1} parent=1 // pred_fallthru
      _
    // Predicated region
    $region18: #{tpu_custom_call.1} parent=1 // pred_check
      _
    $region19: #{tpu_custom_call.1} parent=1 // pred_check_branch
      %45 = sbr.rel (0) target = $region21
    $region20: #{tpu_custom_call.1} parent=1 // pred_region
      _
    $region21: #{tpu_custom_call.1} parent=1 // pred_fallthru
      _
    // Predicated region
    $region22: #{tpu_custom_call.1} parent=1 // pred_check
      _
    $region23: #{tpu_custom_call.1} parent=1 // pred_check_branch
      %47 = sbr.rel (0) target = $region25
    $region24: #{tpu_custom_call.1} parent=1 // pred_region
      %s49 = ssub.s32 4096, 4096
      %50 = vsyncadd [#allocation7], %s49
      %s51 = sshll.u32 [#allocation8], 4
      %s52 = int_to_ptr.vmem [resolvable:$true] %s51
      %57 = dma.hbm_to_vmem [thread:$0]  %s5, 4096, %s52, [#allocation7], 128, 128, 8
    $region25: #{tpu_custom_call.1} parent=1 // pred_fallthru
      _
    // Predicated region
    $region26: #{tpu_custom_call.1} parent=1 // pred_check
      _
    $region27: #{tpu_custom_call.1} parent=1 // pred_check_branch
      %59 = sbr.rel (0) target = $region29
    $region28: #{tpu_custom_call.1} parent=1 // pred_region
      _
    $region29: #{tpu_custom_call.1} parent=1 // pred_fallthru
      _
    // Predicated region
    $region30: #{tpu_custom_call.1} parent=1 // pred_check
      _
    $region31: #{tpu_custom_call.1} parent=1 // pred_check_branch
      %61 = sbr.rel (0) target = $region33
    $region32: #{tpu_custom_call.1} parent=1 // pred_region
      _
    $region33: #{tpu_custom_call.1} parent=1 // pred_fallthru
      _
    // Predicated region
    $region34: #{tpu_custom_call.1} parent=1 // pred_check
      _
    $region35: #{tpu_custom_call.1} parent=1 // pred_check_branch
      %63 = sbr.rel (0) target = $region37
    $region36: #{tpu_custom_call.1} parent=1 // pred_region
      _
    $region37: #{tpu_custom_call.1} parent=1 // pred_fallthru
      _
    // Predicated region
    $region38: #{tpu_custom_call.1} parent=1 // pred_check
      _
    $region39: #{tpu_custom_call.1} parent=1 // pred_check_branch
      %65 = sbr.rel (0) target = $region41
    $region40: #{tpu_custom_call.1} parent=1 // pred_region
      %66 = dma.done [#allocation4], 16
    $region41: #{tpu_custom_call.1} parent=1 // pred_fallthru
      _
    // Predicated region
    $region42: #{tpu_custom_call.1} parent=1 // pred_check
      _
    $region43: #{tpu_custom_call.1} parent=1 // pred_check_branch
      %68 = sbr.rel (0) target = $region45
    $region44: #{tpu_custom_call.1} parent=1 // pred_region
      %69 = dma.done [#allocation7], 384
    $region45: #{tpu_custom_call.1} parent=1 // pred_fallthru
      _
    // Predicated region
    $region46: #{tpu_custom_call.1} parent=1 // pred_check
      _
    $region47: #{tpu_custom_call.1} parent=1 // pred_check_branch
      %71 = sbr.rel (0) target = $region49
    $region48: #{tpu_custom_call.1} parent=1 // pred_region
      %72 = dma.done [#allocation7], 4096
    $region49: #{tpu_custom_call.1} parent=1 // pred_fallthru
      _
    %v74 = vld [vmem:[%s0] sm:$0x1]
    %v75 = vpack.c.bf16 %v74, %v74
    %v76 = vld [vmem:[#allocation3] sm:$0x1]
    %v77 = vpack.c.bf16 %v76, %v76
    %v78 = vld [vmem:[#allocation6] sm:$0xff]
    %v79 = vld [vmem:[#allocation6 + $0x8] sm:$0xff]
    %v80 = vld [vmem:[#allocation6 + $0x10] sm:$0xff]
    %v81 = vld [vmem:[%s3] sm:$0xff]
    %v83 = vunpack.c.l.b16 %v81
    %v84 = vunpack.c.h.b16 %v81
    %v85 = vpack.c.b16 %v83, %v83
    %v86 = vpack.c.b16 %v84, %v84
    %vm87 = vcmask 64512
    %v89 = vsel %vm87, %v77, 0
    %vm91 = vcmask 1043456
    %v93 = vsel %vm91, %v85, 0
    %v96 = vsel %vm91, %v86, 0
    %98 = vmatprep.subr.bf16.mxu0 %v96
    %99 = vmatpush1.bf16.msra.mxu0 %v93
    %100 = vmatprep.subr.bf16.mxu0 0
    %101 = vmatpush1.bf16.msra.mxu0 0
    %102 = vmatprep.subr.bf16.mxu0 0
    %103 = vmatpush1.bf16.msra.mxu0 0
    %104 = vmatprep.subr.bf16.mxu0 0
    %105 = vmatpush1.bf16.msra.mxu0 0
    %106 = vmatprep.subr.bf16.mxu0 0
    %107 = vmatpush1.bf16.msra.mxu0 0
    %108 = vmatprep.subr.bf16.mxu0 0
    %109 = vmatpush1.bf16.msra.mxu0 0
    %110 = vmatprep.subr.bf16.mxu0 0
    %111 = vmatpush1.bf16.msra.mxu0 0
    %112 = vmatprep.subr.bf16.mxu0 0
    %113 = vmatpush1.bf16.msra.mxu0 0
    %114 = vmatprep.subr.bf16.mxu0 0
    %115 = vmatpush1.bf16.msra.mxu0 0
    %116 = vmatprep.subr.bf16.mxu0 0
    %117 = vmatpush1.bf16.msra.mxu0 0
    %118 = vmatprep.subr.bf16.mxu0 0
    %119 = vmatpush1.bf16.msra.mxu0 0
    %120 = vmatprep.subr.bf16.mxu0 0
    %121 = vmatpush1.bf16.msra.mxu0 0
    %122 = vmatprep.subr.bf16.mxu0 0
    %123 = vmatpush1.bf16.msra.mxu0 0
    %124 = vmatprep.subr.bf16.mxu0 0
    %125 = vmatpush1.bf16.msra.mxu0 0
    %126 = vmatprep.subr.bf16.mxu0 0
    %127 = vmatpush1.bf16.msra.mxu0 0
    %128 = vmatprep.subr.bf16.mxu0 0
    %129 = vmatpush1.bf16.msra.mxu0 0
    %130 = vmatprep.mubr.bf16.mxu0 0
    %131 = vmatmul.mubr.bf16.gmra.mrb[0].mxu0 %v89
    %v132 = vpop.f32.mrb[0].mxu0
    %v133 = vadd.f32 0.0, %v132
    %v134 = vpop.f32.mrb[0].mxu0
    %v135 = vadd.f32 0.0, %v134
    %v136 = vpop.f32.mrb[0].mxu0
    %v137 = vpop.f32.mrb[0].mxu0
    %138 = vdwg.mxu0
    %v142 = vunpack.c.l.b16 %v78
    %v143 = vunpack.c.h.b16 %v78
    %v144 = vunpack.c.l.b16 %v79
    %v145 = vunpack.c.h.b16 %v79
    %v146 = vunpack.c.l.b16 %v80
    %v147 = vunpack.c.h.b16 %v80
    %v148 = vpack.c.b16 %v144, %v142
    %v149 = vpack.c.b16 %v145, %v143
    %v150 = vpack.c.b16 %v146, %v146
    %v151 = vpack.c.b16 %v147, %v147
    %vm154 = vcmask 195584
    %v156 = vsel %vm154, %v75, 0
    %v159 = vsel %vm91, %v150, 0
    %v162 = vsel %vm91, %v151, 0
    %164 = vmatprep.subr.bf16.mxu0 %v149
    %165 = vmatpush1.bf16.msra.mxu0 %v148
    %166 = vmatprep.subr.bf16.mxu0 %v162
    %167 = vmatpush1.bf16.msra.mxu0 %v159
    %168 = vmatprep.subr.bf16.mxu0 0
    %169 = vmatpush1.bf16.msra.mxu0 0
    %170 = vmatprep.subr.bf16.mxu0 0
    %171 = vmatpush1.bf16.msra.mxu0 0
    %172 = vmatprep.subr.bf16.mxu0 0
    %173 = vmatpush1.bf16.msra.mxu0 0
    %174 = vmatprep.subr.bf16.mxu0 0
    %175 = vmatpush1.bf16.msra.mxu0 0
    %176 = vmatprep.subr.bf16.mxu0 0
    %177 = vmatpush1.bf16.msra.mxu0 0
    %178 = vmatprep.subr.bf16.mxu0 0
    %179 = vmatpush1.bf16.msra.mxu0 0
    %180 = vmatprep.subr.bf16.mxu0 0
    %181 = vmatpush1.bf16.msra.mxu0 0
    %182 = vmatprep.subr.bf16.mxu0 0
    %183 = vmatpush1.bf16.msra.mxu0 0
    %184 = vmatprep.subr.bf16.mxu0 0
    %185 = vmatpush1.bf16.msra.mxu0 0
    %186 = vmatprep.subr.bf16.mxu0 0
    %187 = vmatpush1.bf16.msra.mxu0 0
    %188 = vmatprep.subr.bf16.mxu0 0
    %189 = vmatpush1.bf16.msra.mxu0 0
    %190 = vmatprep.subr.bf16.mxu0 0
    %191 = vmatpush1.bf16.msra.mxu0 0
    %192 = vmatprep.subr.bf16.mxu0 0
    %193 = vmatpush1.bf16.msra.mxu0 0
    %194 = vmatprep.subr.bf16.mxu0 0
    %195 = vmatpush1.bf16.msra.mxu0 0
    %196 = vmatprep.mubr.bf16.mxu0 0
    %197 = vmatmul.mubr.bf16.gmra.mrb[0].mxu0 %v156
    %v198 = vpop.f32.mrb[0].mxu0
    %v199 = vadd.f32 %v133, %v198
    %v200 = vpop.f32.mrb[0].mxu0
    %v201 = vadd.f32 %v135, %v200
    %v202 = vpop.f32.mrb[0].mxu0
    %v203 = vpop.f32.mrb[0].mxu0
    %204 = vdwg.mxu0
    %v205 = vld [vmem:[%s4] sm:$0x3]
    %v207 = vlaneseq
    %v208 = vshrl.u32 %v207, 7
    %v209 = vsub.s32 0, %v208
    %v210 = vrot.slane %v205, %v209
    %v211 = vlaneseq
    %v212 = vshrl.u32 %v211, 7
    %v213 = vsub.s32 1, %v212
    %v214 = vrot.slane %v205, %v213
    %v217 = vadd.f32 %v199, %v210
    %v218 = vadd.f32 %v201, %v214
    %v219 = vmax.f32 %v217, 0.0
    %v220 = vmax.f32 %v218, 0.0
    %v221 = vpack.c.bf16 %v219, %v219
    %v222 = vpack.c.bf16 %v220, %v220
    %v223 = vld [vmem:[#allocation8] sm:$0xff]
    %v224 = vld [vmem:[#allocation8 + $0x8] sm:$0xff]
    %v225 = vld [vmem:[#allocation8 + $0x10] sm:$0xff]
    %v226 = vld [vmem:[#allocation8 + $0x18] sm:$0xff]
    %v227 = vld [vmem:[#allocation8 + $0x20] sm:$0xff]
    %v228 = vld [vmem:[#allocation8 + $0x28] sm:$0xff]
    %v229 = vld [vmem:[#allocation8 + $0x30] sm:$0xff]
    %v230 = vld [vmem:[#allocation8 + $0x38] sm:$0xff]
    %v231 = vld [vmem:[#allocation8 + $0x40] sm:$0xff]
    %v232 = vld [vmem:[#allocation8 + $0x48] sm:$0xff]
    %v233 = vld [vmem:[#allocation8 + $0x50] sm:$0xff]
    %v234 = vld [vmem:[#allocation8 + $0x58] sm:$0xff]
    %v235 = vld [vmem:[#allocation8 + $0x60] sm:$0xff]
    %v236 = vld [vmem:[#allocation8 + $0x68] sm:$0xff]
    %v237 = vld [vmem:[#allocation8 + $0x70] sm:$0xff]
    %v238 = vld [vmem:[#allocation8 + $0x78] sm:$0xff]
    %v239 = vld [vmem:[#allocation8 + $0x80] sm:$0xff]
    %v240 = vld [vmem:[#allocation8 + $0x88] sm:$0xff]
    %v241 = vld [vmem:[#allocation8 + $0x90] sm:$0xff]
    %v242 = vld [vmem:[#allocation8 + $0x98] sm:$0xff]
    %v243 = vld [vmem:[#allocation8 + $0xa0] sm:$0xff]
    %v244 = vld [vmem:[#allocation8 + $0xa8] sm:$0xff]
    %v245 = vld [vmem:[#allocation8 + $0xb0] sm:$0xff]
    %v246 = vld [vmem:[#allocation8 + $0xb8] sm:$0xff]
    %v247 = vld [vmem:[#allocation8 + $0xc0] sm:$0xff]
    %v248 = vld [vmem:[#allocation8 + $0xc8] sm:$0xff]
    %v249 = vld [vmem:[#allocation8 + $0xd0] sm:$0xff]
    %v250 = vld [vmem:[#allocation8 + $0xd8] sm:$0xff]
    %v251 = vld [vmem:[#allocation8 + $0xe0] sm:$0xff]
    %v252 = vld [vmem:[#allocation8 + $0xe8] sm:$0xff]
    %v253 = vld [vmem:[#allocation8 + $0xf0] sm:$0xff]
    %v254 = vld [vmem:[#allocation8 + $0xf8] sm:$0xff]
    %v255 = vld [vmem:[%s6] sm:$0x3]
    %v288 = vunpack.c.l.b16 %v223
    %v289 = vunpack.c.h.b16 %v223
    %v290 = vunpack.c.l.b16 %v224
    %v291 = vunpack.c.h.b16 %v224
    %v292 = vunpack.c.l.b16 %v225
    %v293 = vunpack.c.h.b16 %v225
    %v294 = vunpack.c.l.b16 %v226
    %v295 = vunpack.c.h.b16 %v226
    %v296 = vunpack.c.l.b16 %v227
    %v297 = vunpack.c.h.b16 %v227
    %v298 = vunpack.c.l.b16 %v228
    %v299 = vunpack.c.h.b16 %v228
    %v300 = vunpack.c.l.b16 %v229
    %v301 = vunpack.c.h.b16 %v229
    %v302 = vunpack.c.l.b16 %v230
    %v303 = vunpack.c.h.b16 %v230
    %v304 = vunpack.c.l.b16 %v231
    %v305 = vunpack.c.h.b16 %v231
    %v306 = vunpack.c.l.b16 %v232
    %v307 = vunpack.c.h.b16 %v232
    %v308 = vunpack.c.l.b16 %v233
    %v309 = vunpack.c.h.b16 %v233
    %v310 = vunpack.c.l.b16 %v234
    %v311 = vunpack.c.h.b16 %v234
    %v312 = vunpack.c.l.b16 %v235
    %v313 = vunpack.c.h.b16 %v235
    %v314 = vunpack.c.l.b16 %v236
    %v315 = vunpack.c.h.b16 %v236
    %v316 = vunpack.c.l.b16 %v237
    %v317 = vunpack.c.h.b16 %v237
    %v318 = vunpack.c.l.b16 %v238
    %v319 = vunpack.c.h.b16 %v238
    %v320 = vunpack.c.l.b16 %v239
    %v321 = vunpack.c.h.b16 %v239
    %v322 = vunpack.c.l.b16 %v240
    %v323 = vunpack.c.h.b16 %v240
    %v324 = vunpack.c.l.b16 %v241
    %v325 = vunpack.c.h.b16 %v241
    %v326 = vunpack.c.l.b16 %v242
    %v327 = vunpack.c.h.b16 %v242
    %v328 = vunpack.c.l.b16 %v243
    %v329 = vunpack.c.h.b16 %v243
    %v330 = vunpack.c.l.b16 %v244
    %v331 = vunpack.c.h.b16 %v244
    %v332 = vunpack.c.l.b16 %v245
    %v333 = vunpack.c.h.b16 %v245
    %v334 = vunpack.c.l.b16 %v246
    %v335 = vunpack.c.h.b16 %v246
    %v336 = vunpack.c.l.b16 %v247
    %v337 = vunpack.c.h.b16 %v247
    %v338 = vunpack.c.l.b16 %v248
    %v339 = vunpack.c.h.b16 %v248
    %v340 = vunpack.c.l.b16 %v249
    %v341 = vunpack.c.h.b16 %v249
    %v342 = vunpack.c.l.b16 %v250
    %v343 = vunpack.c.h.b16 %v250
    %v344 = vunpack.c.l.b16 %v251
    %v345 = vunpack.c.h.b16 %v251
    %v346 = vunpack.c.l.b16 %v252
    %v347 = vunpack.c.h.b16 %v252
    %v348 = vunpack.c.l.b16 %v253
    %v349 = vunpack.c.h.b16 %v253
    %v350 = vunpack.c.l.b16 %v254
    %v351 = vunpack.c.h.b16 %v254
    %v352 = vpack.c.b16 %v290, %v288
    %v353 = vpack.c.b16 %v291, %v289
    %v354 = vpack.c.b16 %v294, %v292
    %v355 = vpack.c.b16 %v295, %v293
    %v356 = vpack.c.b16 %v298, %v296
    %v357 = vpack.c.b16 %v299, %v297
    %v358 = vpack.c.b16 %v302, %v300
    %v359 = vpack.c.b16 %v303, %v301
    %v360 = vpack.c.b16 %v306, %v304
    %v361 = vpack.c.b16 %v307, %v305
    %v362 = vpack.c.b16 %v310, %v308
    %v363 = vpack.c.b16 %v311, %v309
    %v364 = vpack.c.b16 %v314, %v312
    %v365 = vpack.c.b16 %v315, %v313
    %v366 = vpack.c.b16 %v318, %v316
    %v367 = vpack.c.b16 %v319, %v317
    %v368 = vpack.c.b16 %v322, %v320
    %v369 = vpack.c.b16 %v323, %v321
    %v370 = vpack.c.b16 %v326, %v324
    %v371 = vpack.c.b16 %v327, %v325
    %v372 = vpack.c.b16 %v330, %v328
    %v373 = vpack.c.b16 %v331, %v329
    %v374 = vpack.c.b16 %v334, %v332
    %v375 = vpack.c.b16 %v335, %v333
    %v376 = vpack.c.b16 %v338, %v336
    %v377 = vpack.c.b16 %v339, %v337
    %v378 = vpack.c.b16 %v342, %v340
    %v379 = vpack.c.b16 %v343, %v341
    %v380 = vpack.c.b16 %v346, %v344
    %v381 = vpack.c.b16 %v347, %v345
    %v382 = vpack.c.b16 %v350, %v348
    %v383 = vpack.c.b16 %v351, %v349
    %v417 = vlaneseq
    %v418 = vshrl.u32 %v417, 7
    %v419 = vsub.s32 0, %v418
    %v420 = vrot.slane %v255, %v419
    %v421 = vlaneseq
    %v422 = vshrl.u32 %v421, 7
    %v423 = vsub.s32 1, %v422
    %v424 = vrot.slane %v255, %v423
    %427 = vmatprep.subr.bf16.mxu0 %v353
    %428 = vmatpush1.bf16.msra.mxu0 %v352
    %429 = vmatprep.subr.bf16.mxu0 %v355
    %430 = vmatpush1.bf16.msra.mxu0 %v354
    %431 = vmatprep.subr.bf16.mxu0 %v357
    %432 = vmatpush1.bf16.msra.mxu0 %v356
    %433 = vmatprep.subr.bf16.mxu0 %v359
    %434 = vmatpush1.bf16.msra.mxu0 %v358
    %435 = vmatprep.subr.bf16.mxu0 %v361
    %436 = vmatpush1.bf16.msra.mxu0 %v360
    %437 = vmatprep.subr.bf16.mxu0 %v363
    %438 = vmatpush1.bf16.msra.mxu0 %v362
    %439 = vmatprep.subr.bf16.mxu0 %v365
    %440 = vmatpush1.bf16.msra.mxu0 %v364
    %441 = vmatprep.subr.bf16.mxu0 %v367
    %442 = vmatpush1.bf16.msra.mxu0 %v366
    %443 = vmatprep.subr.bf16.mxu0 %v369
    %444 = vmatpush1.bf16.msra.mxu0 %v368
    %445 = vmatprep.subr.bf16.mxu0 %v371
    %446 = vmatpush1.bf16.msra.mxu0 %v370
    %447 = vmatprep.subr.bf16.mxu0 %v373
    %448 = vmatpush1.bf16.msra.mxu0 %v372
    %449 = vmatprep.subr.bf16.mxu0 %v375
    %450 = vmatpush1.bf16.msra.mxu0 %v374
    %451 = vmatprep.subr.bf16.mxu0 %v377
    %452 = vmatpush1.bf16.msra.mxu0 %v376
    %453 = vmatprep.subr.bf16.mxu0 %v379
    %454 = vmatpush1.bf16.msra.mxu0 %v378
    %455 = vmatprep.subr.bf16.mxu0 %v381
    %456 = vmatpush1.bf16.msra.mxu0 %v380
    %457 = vmatprep.subr.bf16.mxu0 %v383
    %458 = vmatpush1.bf16.msra.mxu0 %v382
    %459 = vmatprep.mubr.bf16.mxu0 %v222
    %460 = vmatmul.mubr.bf16.gmra.mrb[0].mxu0 %v221
    %v461 = vpop.f32.mrb[0].mxu0
    %v462 = vadd.f32 %v420, %v461
    %v463 = vpop.f32.mrb[0].mxu0
    %v464 = vadd.f32 %v424, %v463
    %v465 = vpop.f32.mrb[0].mxu0
    %v466 = vpop.f32.mrb[0].mxu0
    %467 = vdwg.mxu0
    %v468 = vmax.f32 %v462, 0.0
    %v469 = vmax.f32 %v464, 0.0
    %v470 = vld [vmem:[%s7] sm:$0x3]
    %v472 = vlaneseq
    %v473 = vshrl.u32 %v472, 7
    %v474 = vsub.s32 0, %v473
    %v475 = vrot.slane %v470, %v474
    %v476 = vlaneseq
    %v477 = vshrl.u32 %v476, 7
    %v478 = vsub.s32 1, %v477
    %v479 = vrot.slane %v470, %v478
    %v482 = vmul.f32 %v468, %v475
    %v483 = vmul.f32 %v469, %v479
    %vm484 = vcmask 1040384
    %v485 = vsel %vm484, %v482, 0.0
    %v486 = vsel %vm484, %v483, 0.0
    %v487 = vadd.f32 %v485, %v486
    %488 = vadd.xlane.f32.xlu0 %v487
    %v489 = vpop.xlane.xlu0 %488
    %s490 = sld [smem:[#allocation2]]
    %v491 = vstv %s490
    %v492 = vadd.f32 %v489, %v491
    %vm493 = vcmask 0
    %494 = vst.msk [vmem:[#allocation9] sm:$0x1] %vm493, %v492
    // Predicated region
    $region50: #{tpu_custom_call.1} parent=1 // pred_check
      _
    $region51: #{tpu_custom_call.1} parent=1 // pred_check_branch
      %496 = sbr.rel (0) target = $region53
    $region52: #{tpu_custom_call.1} parent=1 // pred_region
      %s498 = ssub.s32 16, 16
      %499 = vsyncadd [#allocation5], %s498
      %s501 = sshll.u32 [#allocation9], 4
      %s502 = int_to_ptr.vmem [resolvable:$true] %s501
      %504 = dma.vmem_to_hbm [thread:$0]  %s502, 16, %s9, [#allocation5]
    $region53: #{tpu_custom_call.1} parent=1 // pred_fallthru
      _
    // Predicated region
    $region54: #{tpu_custom_call.1} parent=1 // pred_check
      _
    $region55: #{tpu_custom_call.1} parent=1 // pred_check_branch
      %506 = sbr.rel (0) target = $region57
    $region56: #{tpu_custom_call.1} parent=1 // pred_region
      %507 = dma.done [#allocation5], 16
    $region57: #{tpu_custom_call.1} parent=1 // pred_fallthru
      _
    %508 = vsyncpa [#allocation4], 1
    %509 = vsyncpa [#allocation7], 1
    %510 = vsyncpa [#allocation5], 1

</llo_original>
